<compile_context>
chip_gen: v7x
topology: tpu7x:2x2x1
jax: 0.10.0
libtpu: 0.0.40
codegen_flags: <defaults>
</compile_context>

<pallas_src>
import functools

import jax
import jax.numpy as jnp
from jax import lax
from jax.experimental import pallas as pl
from jax.experimental.pallas import tpu as pltpu

BN_EPS = 1e-5


def _policy_head_kernel(x_ref, wc_ref, bnb_ref, w0_ref, w1_ref, bfc_ref, o_ref,
                        *, p_valid, p_pad):
    # x_ref  : (Bt, C, HW)   bf16  batch tile of the input (NCHW, spatial flattened)
    # wc_ref : (2, C)        bf16  BN-folded 1x1-conv weight
    # bnb_ref: (1, 2, 1)     f32   BN-folded bias
    # w0/w1  : (HW, P_pad)   bf16  FC weight halves (pre-transposed, zero-padded cols)
    # bfc_ref: (1, P_pad)    f32   FC bias (zero-padded)
    # o_ref  : (Bt, P_pad)   f32   softmax output tile
    bt = x_ref.shape[0]

    x = x_ref[...]                                                  # (Bt, C, HW) bf16
    wc = jnp.broadcast_to(wc_ref[...], (bt,) + wc_ref.shape)        # (Bt, 2, C)

    # 1x1 conv (BN scale folded in) as a batched MXU matmul with f32 accumulation.
    y = jnp.einsum("bkc,bcs->bks", wc, x,
                   preferred_element_type=jnp.float32)              # (Bt, 2, HW) f32

    # Folded BatchNorm bias + ReLU.
    y = jnp.maximum(y + bnb_ref[...], 0.0)

    # Channel-major flatten == two accumulated (Bt,HW)@(HW,P) dots; no in-kernel reshape.
    y0 = y[:, 0, :].astype(jnp.bfloat16)                            # (Bt, HW)
    y1 = y[:, 1, :].astype(jnp.bfloat16)
    z = (jnp.dot(y0, w0_ref[...], preferred_element_type=jnp.float32)
         + jnp.dot(y1, w1_ref[...], preferred_element_type=jnp.float32)
         + bfc_ref[...])                                            # (Bt, P_pad) f32
    z = jnp.maximum(z, 0.0)

    # Keep padded lanes out of the softmax.
    if p_pad != p_valid:
        lane = lax.broadcasted_iota(jnp.int32, (1, p_pad), 1)
        z = jnp.where(lane < p_valid, z, -1e30)

    # Softmax over the policy dimension (lane-axis reductions -> XLU; approx recip -> EUP).
    z = z - jnp.max(z, axis=-1, keepdims=True)
    e = jnp.exp(z)
    probs = e * pl.reciprocal(jnp.sum(e, axis=-1, keepdims=True), approx=True)
    o_ref[...] = probs.astype(o_ref.dtype)


def prepare_policy_head_params(params, H, W):
    """One-time parameter preparation (do NOT re-run per forward call):
    fold BN (inference form) into the conv, split/transpose/pad the FC weight,
    cast the MXU operands to bf16."""
    HW = H * W
    wconv = params["wconv"].astype(jnp.float32)              # (2, C)
    gamma = params["gamma"].astype(jnp.float32).reshape(2)
    beta = params["beta"].astype(jnp.float32).reshape(2)
    mean = params["mean"].astype(jnp.float32).reshape(2)
    var = params["var"].astype(jnp.float32).reshape(2)
    wfc = params["wfc"].astype(jnp.float32)                   # (P, 2*HW)
    bfc = params["bfc"].astype(jnp.float32)                   # (P,)
    P = wfc.shape[0]
    assert wfc.shape[1] == 2 * HW, "output_size must equal 2*H*W"

    scale = gamma * lax.rsqrt(var + BN_EPS)                   # (2,)
    wc_folded = (wconv * scale[:, None]).astype(jnp.bfloat16)  # (2, C)
    bn_bias = (beta - mean * scale).reshape(1, 2, 1)           # (1, 2, 1) f32

    P_pad = ((P + 127) // 128) * 128                           # lane-dense output width
    w0 = jnp.zeros((HW, P_pad), jnp.bfloat16).at[:, :P].set(
        wfc[:, :HW].T.astype(jnp.bfloat16))
    w1 = jnp.zeros((HW, P_pad), jnp.bfloat16).at[:, :P].set(
        wfc[:, HW:].T.astype(jnp.bfloat16))
    bfc_p = jnp.zeros((1, P_pad), jnp.float32).at[:, :P].set(bfc)

    return dict(wc=wc_folded, bn_bias=bn_bias, w0=w0, w1=w1, bfc=bfc_p,
                P=P, P_pad=P_pad, HW=HW)


def _pick_batch_tile(bs, c, hw, p_pad, vmem_budget=36 * 2**20):
    """Largest batch tile (multiple of 8, capped at 128) whose double-buffered x block
    plus resident FC weights fits a conservative VMEM budget (safe on v7x's 64 MiB)."""
    x_row_bytes = c * hw * 2                                   # bf16 x row
    weight_bytes = 2 * (hw * p_pad * 2) * 2 + p_pad * 4 * 4    # w0,w1 (2-buffered) + bias
    avail = max(vmem_budget - weight_bytes, 2 * x_row_bytes)
    bt = int(avail // (2 * x_row_bytes))                       # x block is double-buffered
    bt = max(1, min(bt, 128))                                  # M=128 saturates the MXU
    if bt >= bs:
        return bs                                              # single full-batch block
    return max(8, (bt // 8) * 8)                               # keep sublane-aligned tiles


def policy_head_forward(x_nchw, prepared, policy_output_shape):
    bs, C, H, W = x_nchw.shape
    HW = H * W
    assert HW == prepared["HW"]
    P, P_pad = prepared["P"], prepared["P_pad"]

    bt = _pick_batch_tile(bs, C, HW, P_pad)
    nblk = -(-bs // bt)
    bs_pad = nblk * bt

    x3 = x_nchw.reshape(bs, C, HW).astype(jnp.bfloat16)        # channel-major, bf16 stream
    if bs_pad != bs:
        x3 = jnp.pad(x3, ((0, bs_pad - bs), (0, 0), (0, 0)))

    kernel = functools.partial(_policy_head_kernel, p_valid=P, p_pad=P_pad)

    out = pl.pallas_call(
        kernel,
        out_shape=jax.ShapeDtypeStruct((bs_pad, P_pad), jnp.float32),
        grid_spec=pltpu.PrefetchScalarGridSpec(
            num_scalar_prefetch=0,
            grid=(nblk,),
            in_specs=[
                pl.BlockSpec((bt, C, HW), lambda b: (b, 0, 0)),    # x tile (streamed)
                pl.BlockSpec((2, C), lambda b: (0, 0)),            # folded conv weight
                pl.BlockSpec((1, 2, 1), lambda b: (0, 0, 0)),      # folded BN bias
                pl.BlockSpec((HW, P_pad), lambda b: (0, 0)),       # FC weight half 0
                pl.BlockSpec((HW, P_pad), lambda b: (0, 0)),       # FC weight half 1
                pl.BlockSpec((1, P_pad), lambda b: (0, 0)),        # FC bias
            ],
            out_specs=pl.BlockSpec((bt, P_pad), lambda b: (b, 0)),
        ),
        compiler_params=pltpu.CompilerParams(
            dimension_semantics=("parallel",),          # batch axis -> both TCs on v7x
            vmem_limit_bytes=64 * 1024 * 1024,
        ),
    )(x3, prepared["wc"], prepared["bn_bias"], prepared["w0"],
      prepared["w1"], prepared["bfc"])

    out = out[:bs, :P]                                   # drop batch / lane padding
    return out.reshape((bs,) + tuple(policy_output_shape))


def policy_head_ref(x_nchw, params, policy_output_shape):
    """Pure-JAX f32 reference mirroring the PyTorch forward (inference-mode BN)."""
    bs = x_nchw.shape[0]
    y = jnp.einsum("kc,bchw->bkhw", params["wconv"], x_nchw)
    inv = 1.0 / jnp.sqrt(params["var"] + BN_EPS)
    y = (y - params["mean"][None, :, None, None]) * (params["gamma"] * inv)[None, :, None, None] \
        + params["beta"][None, :, None, None]
    y = jnp.maximum(y, 0.0)
    flat = y.reshape(bs, -1)                              # channel-major, matches torch .view
    z = flat @ params["wfc"].T + params["bfc"]
    z = jnp.maximum(z, 0.0)
    probs = jax.nn.softmax(z, axis=1)
    return probs.reshape((bs,) + tuple(policy_output_shape))


if __name__ == "__main__":
    # Small shapes consistent with the module: output_size must equal 2*H*W.
    bs, filter_size, H, W = 2, 32, 4, 4
    output_size = 2 * H * W                 # 32
    policy_output_shape = (output_size,)    # (32,)

    key = jax.random.PRNGKey(0)
    kx, kwc, kg, kb, km, kv, kwf, kbf = jax.random.split(key, 8)

    x = jax.random.normal(kx, (bs, filter_size, H, W), dtype=jnp.float32)
    params = {
        "wconv": 0.1 * jax.random.normal(kwc, (2, filter_size), dtype=jnp.float32),
        "gamma": 1.0 + 0.1 * jax.random.normal(kg, (2,), dtype=jnp.float32),
        "beta": 0.1 * jax.random.normal(kb, (2,), dtype=jnp.float32),
        "mean": 0.1 * jax.random.normal(km, (2,), dtype=jnp.float32),
        "var": jax.random.uniform(kv, (2,), dtype=jnp.float32, minval=0.5, maxval=1.5),
        "wfc": 0.1 * jax.random.normal(kwf, (output_size, output_size), dtype=jnp.float32),
        "bfc": 0.1 * jax.random.normal(kbf, (output_size,), dtype=jnp.float32),
    }

    prepared = prepare_policy_head_params(params, H, W)   # one-time parameter prep
    out = policy_head_forward(x, prepared, policy_output_shape)
    out = jax.block_until_ready(out)

    ref = policy_head_ref(x, params, policy_output_shape)
    assert out.shape == (bs,) + policy_output_shape
    # bf16 MXU operands + approx softmax reciprocal -> compare vs the f32 reference
    # with a correspondingly loosened tolerance.
    assert jnp.allclose(out, ref, rtol=5e-2, atol=2e-3), "mismatch vs pure-JAX reference"
    assert jnp.allclose(jnp.sum(out, axis=1), 1.0, atol=1e-2), "softmax rows must sum to ~1"

    print("KERNEL_OK")
</pallas_src>

<mosaic_0001>
module attributes {stable_mosaic.version = 11 : i64} {
  func.func @_policy_head_kernel(%arg0: i32, %arg1: memref<2x32x16xbf16, #tpu.memory_space<vmem>>, %arg2: memref<2x32xbf16, #tpu.memory_space<vmem>>, %arg3: memref<1x2x1xf32, #tpu.memory_space<vmem>>, %arg4: memref<16x128xbf16, #tpu.memory_space<vmem>>, %arg5: memref<16x128xbf16, #tpu.memory_space<vmem>>, %arg6: memref<1x128xf32, #tpu.memory_space<vmem>>, %arg7: memref<2x128xf32, #tpu.memory_space<vmem>>) attributes {dimension_semantics = [#tpu.dimension_semantics<parallel>], iteration_bounds = array<i64: 1>, scalar_prefetch = 0 : i64, scratch_operands = 0 : i64, tpu.core_type = #tpu.core_type<tc>, window_params = [{transform_indices = @transform_0, window_bounds = array<i64: 2, 32, 16>}, {pipeline_mode = #tpu.pipeline_mode<synchronous>, transform_indices = @transform_1, window_bounds = array<i64: 2, 32>}, {pipeline_mode = #tpu.pipeline_mode<synchronous>, transform_indices = @transform_2, window_bounds = array<i64: 1, 2, 1>}, {pipeline_mode = #tpu.pipeline_mode<synchronous>, transform_indices = @transform_3, window_bounds = array<i64: 16, 128>}, {pipeline_mode = #tpu.pipeline_mode<synchronous>, transform_indices = @transform_4, window_bounds = array<i64: 16, 128>}, {pipeline_mode = #tpu.pipeline_mode<synchronous>, transform_indices = @transform_5, window_bounds = array<i64: 1, 128>}, {transform_indices = @transform_6, window_bounds = array<i64: 2, 128>}]} {
    %c0 = arith.constant 0 : index
    %c0_0 = arith.constant 0 : index
    %c0_1 = arith.constant 0 : index
    %0 = vector.load %arg1[%c0, %c0_0, %c0_1] : memref<2x32x16xbf16, #tpu.memory_space<vmem>>, vector<2x32x16xbf16>
    %c0_2 = arith.constant 0 : index
    %c0_3 = arith.constant 0 : index
    %1 = vector.load %arg2[%c0_2, %c0_3] : memref<2x32xbf16, #tpu.memory_space<vmem>>, vector<2x32xbf16>
    %2 = vector.shape_cast %1 : vector<2x32xbf16> to vector<1x2x32xbf16>
    %3 = vector.broadcast %2 : vector<1x2x32xbf16> to vector<2x2x32xbf16>
    "tpu.trace_start"() <{level = 10 : i32, message = "bkc,bcs->bks"}> : () -> ()
    %cst = arith.constant dense<0.000000e+00> : vector<2x2x16xf32>
    %4 = tpu.matmul %3, %0, %cst {dimension_numbers = #tpu.dot_dimension_numbers<[2], [1], [1], [2], [0, 0, 0, 1, 1, 2], [0], [0]>} : vector<2x2x32xbf16>, vector<2x32x16xbf16>, vector<2x2x16xf32> -> vector<2x2x16xf32>
    "tpu.trace_stop"() : () -> ()
    %c0_4 = arith.constant 0 : index
    %c0_5 = arith.constant 0 : index
    %c0_6 = arith.constant 0 : index
    %5 = vector.load %arg3[%c0_4, %c0_5, %c0_6] : memref<1x2x1xf32, #tpu.memory_space<vmem>>, vector<1x2x1xf32>
    %6 = vector.broadcast %5 : vector<1x2x1xf32> to vector<2x2x16xf32>
    %7 = arith.addf %4, %6 : vector<2x2x16xf32>
    %cst_7 = arith.constant 0.000000e+00 : f32
    %8 = vector.broadcast %cst_7 : f32 to vector<2x2x16xf32>
    %9 = arith.maximumf %7, %8 : vector<2x2x16xf32>
    %10 = vector.extract_strided_slice %9 {offsets = [0, 0, 0], sizes = [2, 1, 16], strides = [1, 1, 1]} : vector<2x2x16xf32> to vector<2x1x16xf32>
    %11 = vector.shape_cast %10 : vector<2x1x16xf32> to vector<2x16xf32>
    %12 = arith.truncf %11 : vector<2x16xf32> to vector<2x16xbf16>
    %13 = vector.extract_strided_slice %9 {offsets = [0, 1, 0], sizes = [2, 1, 16], strides = [1, 1, 1]} : vector<2x2x16xf32> to vector<2x1x16xf32>
    %14 = vector.shape_cast %13 : vector<2x1x16xf32> to vector<2x16xf32>
    %15 = arith.truncf %14 : vector<2x16xf32> to vector<2x16xbf16>
    %c0_8 = arith.constant 0 : index
    %c0_9 = arith.constant 0 : index
    %16 = vector.load %arg4[%c0_8, %c0_9] : memref<16x128xbf16, #tpu.memory_space<vmem>>, vector<16x128xbf16>
    %cst_10 = arith.constant dense<0.000000e+00> : vector<2x128xf32>
    %17 = tpu.matmul %12, %16, %cst_10 {dimension_numbers = #tpu.dot_dimension_numbers<[1], [0], [0], [1], [0, 0, 1, 1], [], []>} : vector<2x16xbf16>, vector<16x128xbf16>, vector<2x128xf32> -> vector<2x128xf32>
    %c0_11 = arith.constant 0 : index
    %c0_12 = arith.constant 0 : index
    %18 = vector.load %arg5[%c0_11, %c0_12] : memref<16x128xbf16, #tpu.memory_space<vmem>>, vector<16x128xbf16>
    %cst_13 = arith.constant dense<0.000000e+00> : vector<2x128xf32>
    %19 = tpu.matmul %15, %18, %cst_13 {dimension_numbers = #tpu.dot_dimension_numbers<[1], [0], [0], [1], [0, 0, 1, 1], [], []>} : vector<2x16xbf16>, vector<16x128xbf16>, vector<2x128xf32> -> vector<2x128xf32>
    %20 = arith.addf %17, %19 : vector<2x128xf32>
    %c0_14 = arith.constant 0 : index
    %c0_15 = arith.constant 0 : index
    %21 = vector.load %arg6[%c0_14, %c0_15] : memref<1x128xf32, #tpu.memory_space<vmem>>, vector<1x128xf32>
    %22 = vector.broadcast %21 : vector<1x128xf32> to vector<2x128xf32>
    %23 = arith.addf %20, %22 : vector<2x128xf32>
    %cst_16 = arith.constant 0.000000e+00 : f32
    %24 = vector.broadcast %cst_16 : f32 to vector<2x128xf32>
    %25 = arith.maximumf %23, %24 : vector<2x128xf32>
    %26 = tpu.iota {dimensions = array<i32: 1>} : vector<1x128xi32>
    %c32_i32 = arith.constant 32 : i32
    %27 = vector.broadcast %c32_i32 : i32 to vector<1x128xi32>
    %28 = arith.cmpi slt, %26, %27 : vector<1x128xi32>
    %cst_17 = arith.constant -1.000000e+30 : f32
    %29 = vector.shape_cast %28 : vector<1x128xi1> to vector<1x128xi1>
    %30 = vector.broadcast %29 : vector<1x128xi1> to vector<2x128xi1>
    %31 = vector.broadcast %cst_17 : f32 to vector<2x128xf32>
    %32 = arith.select %30, %25, %31 : vector<2x128xi1>, vector<2x128xf32>
    %cst_18 = arith.constant dense<0xFF800000> : vector<2xf32>
    %33 = vector.multi_reduction <maximumf>, %32, %cst_18 [1] : vector<2x128xf32> to vector<2xf32>
    %34 = vector.shape_cast %33 : vector<2xf32> to vector<2x1xf32>
    %35 = vector.broadcast %34 : vector<2x1xf32> to vector<2x128xf32>
    %36 = arith.subf %32, %35 : vector<2x128xf32>
    %37 = math.exp %36 : vector<2x128xf32>
    %cst_19 = arith.constant dense<0.000000e+00> : vector<2xf32>
    %38 = vector.multi_reduction <add>, %37, %cst_19 [1] : vector<2x128xf32> to vector<2xf32>
    %39 = vector.shape_cast %38 : vector<2xf32> to vector<2x1xf32>
    %40 = tpu.reciprocal %39 {approx = true} : vector<2x1xf32> -> vector<2x1xf32>
    %41 = vector.broadcast %40 : vector<2x1xf32> to vector<2x128xf32>
    %42 = arith.mulf %37, %41 : vector<2x128xf32>
    %c0_20 = arith.constant 0 : index
    %c0_21 = arith.constant 0 : index
    %43 = vector.load %arg7[%c0_20, %c0_21] : memref<2x128xf32, #tpu.memory_space<vmem>>, vector<2x128xf32>
    tpu.vector_store %arg7[%c0_20, %c0_21], %42 {strides = array<i32>} : memref<2x128xf32, #tpu.memory_space<vmem>>, vector<2x128xf32>,
    return
  }
  func.func @transform_0(%arg0: i32) -> (i32, i32, i32) {
    %c0_i32 = arith.constant 0 : i32
    %c0_i32_0 = arith.constant 0 : i32
    %c0_i32_1 = arith.constant 0 : i32
    return %arg0, %c0_i32, %c0_i32_0 : i32, i32, i32
  }
  func.func @transform_1(%arg0: i32) -> (i32, i32) {
    %c0_i32 = arith.constant 0 : i32
    %c0_i32_0 = arith.constant 0 : i32
    %c0_i32_1 = arith.constant 0 : i32
    return %c0_i32, %c0_i32_0 : i32, i32
  }
  func.func @transform_2(%arg0: i32) -> (i32, i32, i32) {
    %c0_i32 = arith.constant 0 : i32
    %c0_i32_0 = arith.constant 0 : i32
    %c0_i32_1 = arith.constant 0 : i32
    %c0_i32_2 = arith.constant 0 : i32
    return %c0_i32, %c0_i32_0, %c0_i32_1 : i32, i32, i32
  }
  func.func @transform_3(%arg0: i32) -> (i32, i32) {
    %c0_i32 = arith.constant 0 : i32
    %c0_i32_0 = arith.constant 0 : i32
    %c0_i32_1 = arith.constant 0 : i32
    return %c0_i32, %c0_i32_0 : i32, i32
  }
  func.func @transform_4(%arg0: i32) -> (i32, i32) {
    %c0_i32 = arith.constant 0 : i32
    %c0_i32_0 = arith.constant 0 : i32
    %c0_i32_1 = arith.constant 0 : i32
    return %c0_i32, %c0_i32_0 : i32, i32
  }
  func.func @transform_5(%arg0: i32) -> (i32, i32) {
    %c0_i32 = arith.constant 0 : i32
    %c0_i32_0 = arith.constant 0 : i32
    %c0_i32_1 = arith.constant 0 : i32
    return %c0_i32, %c0_i32_0 : i32, i32
  }
  func.func @transform_6(%arg0: i32) -> (i32, i32) {
    %c0_i32 = arith.constant 0 : i32
    %c0_i32_0 = arith.constant 0 : i32
    return %arg0, %c0_i32 : i32, i32
  }
}

</mosaic_0001>

<llo_original>
// kernel: tpu_custom_call.1
$region0: #{tpu_custom_call.1}
  #allocation0 [shape = 'u32[]', space=smem, size = 0x4, offset = 0x4, fixed_abs, tag = 'smem constant byte address 0x4 - core index']
  #allocation1 [shape = 'u32[144,128]{1,0:T(1,128)}', space=vmem, size = 0x12000, scoped, tag = 'internal scratch']
  %s0 = inlined_call_operand.hbm [shape: bf16[2,32,16], index: 0, kind: input, shape index: {}]
  %s1 = inlined_call_operand.hbm [shape: bf16[2,32], index: 1, kind: input, shape index: {}]
  %s2 = inlined_call_operand.hbm [shape: f32[1,2,1], index: 2, kind: input, shape index: {}]
  %s3 = inlined_call_operand.hbm [shape: bf16[16,128], index: 3, kind: input, shape index: {}]
  %s4 = inlined_call_operand.hbm [shape: bf16[16,128], index: 4, kind: input, shape index: {}]
  %s5 = inlined_call_operand.hbm [shape: f32[1,128], index: 5, kind: input, shape index: {}]
  %s6 = inlined_call_operand.hbm [shape: f32[2,128], index: 6, kind: output, shape index: {}]
  %s7 = sld [smem:[#allocation0]]
  $region58: #{tpu_custom_call.1} parent=0
    _
  %s9 = ssub.s32 1, %s7
  %s10 = scalar_select 0, %s9, %s7
  $region1: #{tpu_custom_call.1} parent=0
    #allocation2 [shape = 'u8[16384]{0}', space=vmem, size = 0x4000, scoped, tag = 'input window, operand 0, single buffered']
    #allocation3 [shape = 's32[1]{0}', space=sflag, size = 0x4, scoped, tag = 'scoped memory for tpu_custom_call.1']
    #allocation4 [shape = 's32[1]{0}', space=sflag, size = 0x4, scoped, tag = 'scoped memory for tpu_custom_call.1']
    #allocation5 [shape = 'u8[512]{0}', space=vmem, size = 0x400, scoped, tag = 'input window, operand 1, single buffered']
    #allocation6 [shape = 's32[1]{0}', space=sflag, size = 0x4, scoped, tag = 'scoped memory for tpu_custom_call.1']
    #allocation7 [shape = 'u8[1024]{0}', space=vmem, size = 0x400, scoped, tag = 'input window, operand 2, single buffered']
    #allocation8 [shape = 'u8[4096]{0}', space=vmem, size = 0x1000, scoped, tag = 'input window, operand 3, single buffered']
    #allocation9 [shape = 's32[1]{0}', space=sflag, size = 0x4, scoped, tag = 'scoped memory for tpu_custom_call.1']
    #allocation10 [shape = 'u8[4096]{0}', space=vmem, size = 0x1000, scoped, tag = 'input window, operand 4, single buffered']
    #allocation11 [shape = 'u8[512]{0}', space=vmem, size = 0x400, scoped, tag = 'input window, operand 5, single buffered']
    #allocation12 [shape = 's32[1]{0}', space=sflag, size = 0x4, scoped, tag = 'scoped memory for tpu_custom_call.1']
    #allocation13 [shape = 'u8[1024]{0}', space=vmem, size = 0x400, scoped, tag = 'output window, operand 0, single buffered']
    %11 = vsyncpa [#allocation3], 0
    %12 = vsyncpa [#allocation6], 0
    %13 = vsyncpa [#allocation9], 0
    %14 = vsyncpa [#allocation12], 0
    %15 = vsyncpa [#allocation4], 0
    // Predicated region
    $region2: #{tpu_custom_call.1} parent=1 // pred_check
      _
    $region3: #{tpu_custom_call.1} parent=1 // pred_check_branch
      %17 = sbr.rel (0) target = $region5
    $region4: #{tpu_custom_call.1} parent=1 // pred_region
      %s19 = ssub.s32 512, 512
      %20 = vsyncadd [#allocation3], %s19
      %s21 = sshll.u32 [#allocation2], 4
      %s22 = int_to_ptr.vmem [resolvable:$true] %s21
      %27 = dma.hbm_to_vmem [thread:$0]  %s0, 512, %s22, [#allocation3], 64, 64, 4
    $region5: #{tpu_custom_call.1} parent=1 // pred_fallthru
      _
    // Predicated region
    $region6: #{tpu_custom_call.1} parent=1 // pred_check
      _
    $region7: #{tpu_custom_call.1} parent=1 // pred_check_branch
      %29 = sbr.rel (0) target = $region9
    $region8: #{tpu_custom_call.1} parent=1 // pred_region
      %s31 = ssub.s32 16, 16
      %32 = vsyncadd [#allocation6], %s31
      %s34 = sshll.u32 [#allocation5], 4
      %s35 = int_to_ptr.vmem [resolvable:$true] %s34
      %37 = dma.hbm_to_vmem [thread:$0]  %s1, 16, %s35, [#allocation6]
    $region9: #{tpu_custom_call.1} parent=1 // pred_fallthru
      _
    // Predicated region
    $region10: #{tpu_custom_call.1} parent=1 // pred_check
      _
    $region11: #{tpu_custom_call.1} parent=1 // pred_check_branch
      %39 = sbr.rel (0) target = $region13
    $region12: #{tpu_custom_call.1} parent=1 // pred_region
      %s41 = ssub.s32 32, 32
      %42 = vsyncadd [#allocation6], %s41
      %s44 = sshll.u32 [#allocation7], 4
      %s45 = int_to_ptr.vmem [resolvable:$true] %s44
      %47 = dma.hbm_to_vmem [thread:$0]  %s2, 32, %s45, [#allocation6]
    $region13: #{tpu_custom_call.1} parent=1 // pred_fallthru
      _
    // Predicated region
    $region14: #{tpu_custom_call.1} parent=1 // pred_check
      _
    $region15: #{tpu_custom_call.1} parent=1 // pred_check_branch
      %49 = sbr.rel (0) target = $region17
    $region16: #{tpu_custom_call.1} parent=1 // pred_region
      %s51 = ssub.s32 128, 128
      %52 = vsyncadd [#allocation9], %s51
      %s53 = sshll.u32 [#allocation8], 4
      %s54 = int_to_ptr.vmem [resolvable:$true] %s53
      %59 = dma.hbm_to_vmem [thread:$0]  %s3, 128, %s54, [#allocation9], 64, 64, 4
    $region17: #{tpu_custom_call.1} parent=1 // pred_fallthru
      _
    // Predicated region
    $region18: #{tpu_custom_call.1} parent=1 // pred_check
      _
    $region19: #{tpu_custom_call.1} parent=1 // pred_check_branch
      %61 = sbr.rel (0) target = $region21
    $region20: #{tpu_custom_call.1} parent=1 // pred_region
      %s63 = ssub.s32 128, 128
      %64 = vsyncadd [#allocation9], %s63
      %s65 = sshll.u32 [#allocation10], 4
      %s66 = int_to_ptr.vmem [resolvable:$true] %s65
      %71 = dma.hbm_to_vmem [thread:$0]  %s4, 128, %s66, [#allocation9], 64, 64, 4
    $region21: #{tpu_custom_call.1} parent=1 // pred_fallthru
      _
    // Predicated region
    $region22: #{tpu_custom_call.1} parent=1 // pred_check
      _
    $region23: #{tpu_custom_call.1} parent=1 // pred_check_branch
      %73 = sbr.rel (0) target = $region25
    $region24: #{tpu_custom_call.1} parent=1 // pred_region
      %s75 = ssub.s32 16, 16
      %76 = vsyncadd [#allocation12], %s75
      %s78 = sshll.u32 [#allocation11], 4
      %s79 = int_to_ptr.vmem [resolvable:$true] %s78
      %81 = dma.hbm_to_vmem [thread:$0]  %s5, 16, %s79, [#allocation12]
    $region25: #{tpu_custom_call.1} parent=1 // pred_fallthru
      _
    // Predicated region
    $region26: #{tpu_custom_call.1} parent=1 // pred_check
      _
    $region27: #{tpu_custom_call.1} parent=1 // pred_check_branch
      %83 = sbr.rel (0) target = $region29
    $region28: #{tpu_custom_call.1} parent=1 // pred_region
      %84 = dma.done [#allocation3], 512
    $region29: #{tpu_custom_call.1} parent=1 // pred_fallthru
      _
    // Predicated region
    $region30: #{tpu_custom_call.1} parent=1 // pred_check
      _
    $region31: #{tpu_custom_call.1} parent=1 // pred_check_branch
      %86 = sbr.rel (0) target = $region33
    $region32: #{tpu_custom_call.1} parent=1 // pred_region
      %87 = dma.done [#allocation6], 16
    $region33: #{tpu_custom_call.1} parent=1 // pred_fallthru
      _
    // Predicated region
    $region34: #{tpu_custom_call.1} parent=1 // pred_check
      _
    $region35: #{tpu_custom_call.1} parent=1 // pred_check_branch
      %89 = sbr.rel (0) target = $region37
    $region36: #{tpu_custom_call.1} parent=1 // pred_region
      %90 = dma.done [#allocation6], 32
    $region37: #{tpu_custom_call.1} parent=1 // pred_fallthru
      _
    // Predicated region
    $region38: #{tpu_custom_call.1} parent=1 // pred_check
      _
    $region39: #{tpu_custom_call.1} parent=1 // pred_check_branch
      %92 = sbr.rel (0) target = $region41
    $region40: #{tpu_custom_call.1} parent=1 // pred_region
      %93 = dma.done [#allocation9], 128
    $region41: #{tpu_custom_call.1} parent=1 // pred_fallthru
      _
    // Predicated region
    $region42: #{tpu_custom_call.1} parent=1 // pred_check
      _
    $region43: #{tpu_custom_call.1} parent=1 // pred_check_branch
      %95 = sbr.rel (0) target = $region45
    $region44: #{tpu_custom_call.1} parent=1 // pred_region
      %96 = dma.done [#allocation9], 128
    $region45: #{tpu_custom_call.1} parent=1 // pred_fallthru
      _
    // Predicated region
    $region46: #{tpu_custom_call.1} parent=1 // pred_check
      _
    $region47: #{tpu_custom_call.1} parent=1 // pred_check_branch
      %98 = sbr.rel (0) target = $region49
    $region48: #{tpu_custom_call.1} parent=1 // pred_region
      %99 = dma.done [#allocation12], 16
    $region49: #{tpu_custom_call.1} parent=1 // pred_fallthru
      _
    %v101 = vld [vmem:[#allocation2] sm:$0xf]
    %v102 = vld [vmem:[#allocation2 + $0x4] sm:$0xf]
    %v103 = vld [vmem:[#allocation2 + $0x8] sm:$0xf]
    %v104 = vld [vmem:[#allocation2 + $0xc] sm:$0xf]
    %v105 = vld [vmem:[#allocation2 + $0x10] sm:$0xf]
    %v106 = vld [vmem:[#allocation2 + $0x14] sm:$0xf]
    %v107 = vld [vmem:[#allocation2 + $0x18] sm:$0xf]
    %v108 = vld [vmem:[#allocation2 + $0x1c] sm:$0xf]
    %v109 = vld [vmem:[#allocation5] sm:$0x1]
    %v110 = vld [vmem:[#allocation7] sm:$0x3]
    %112 = vset.pattern.permute.xlu0 0
    %113 = vperm.xlu0 %112, %v110
    %v114 = vpop.permute.xlu0 %113
    %v120 = vunpack.c.l.b16 %v101
    %v121 = vunpack.c.l.b16 %v102
    %v122 = vunpack.c.l.b16 %v103
    %v123 = vunpack.c.l.b16 %v104
    %v124 = vpack.c.b16 %v121, %v120
    %v125 = vpack.c.b16 %v123, %v122
    %vm128 = vcmask 261120
    %v130 = vsel %vm128, %v109, 0
    %132 = vmatprep.subr.bf16.mxu0 0
    %133 = vmatpush1.bf16.msra.mxu0 %v124
    %134 = vmatprep.subr.bf16.mxu0 0
    %135 = vmatpush1.bf16.msra.mxu0 %v125
    %136 = vmatprep.subr.bf16.mxu0 0
    %137 = vmatpush1.bf16.msra.mxu0 0
    %138 = vmatprep.subr.bf16.mxu0 0
    %139 = vmatpush1.bf16.msra.mxu0 0
    %140 = vmatprep.subr.bf16.mxu0 0
    %141 = vmatpush1.bf16.msra.mxu0 0
    %142 = vmatprep.subr.bf16.mxu0 0
    %143 = vmatpush1.bf16.msra.mxu0 0
    %144 = vmatprep.subr.bf16.mxu0 0
    %145 = vmatpush1.bf16.msra.mxu0 0
    %146 = vmatprep.subr.bf16.mxu0 0
    %147 = vmatpush1.bf16.msra.mxu0 0
    %148 = vmatprep.subr.bf16.mxu0 0
    %149 = vmatpush1.bf16.msra.mxu0 0
    %150 = vmatprep.subr.bf16.mxu0 0
    %151 = vmatpush1.bf16.msra.mxu0 0
    %152 = vmatprep.subr.bf16.mxu0 0
    %153 = vmatpush1.bf16.msra.mxu0 0
    %154 = vmatprep.subr.bf16.mxu0 0
    %155 = vmatpush1.bf16.msra.mxu0 0
    %156 = vmatprep.subr.bf16.mxu0 0
    %157 = vmatpush1.bf16.msra.mxu0 0
    %158 = vmatprep.subr.bf16.mxu0 0
    %159 = vmatpush1.bf16.msra.mxu0 0
    %160 = vmatprep.subr.bf16.mxu0 0
    %161 = vmatpush1.bf16.msra.mxu0 0
    %162 = vmatprep.subr.bf16.mxu0 0
    %163 = vmatpush1.bf16.msra.mxu0 0
    %164 = vmatprep.mubr.bf16.mxu0 0
    %165 = vmatmul.mubr.bf16.gmra.mrb[0].mxu0 %v130
    %v166 = vpop.f32.mrb[0].mxu0
    %v167 = vadd.f32 %v114, %v166
    %v168 = vpop.f32.mrb[0].mxu0
    %v169 = vpop.f32.mrb[0].mxu0
    %v170 = vpop.f32.mrb[0].mxu0
    %171 = vdwg.mxu0
    %v176 = vunpack.c.l.b16 %v105
    %v177 = vunpack.c.l.b16 %v106
    %v178 = vunpack.c.l.b16 %v107
    %v179 = vunpack.c.l.b16 %v108
    %v180 = vpack.c.b16 %v177, %v176
    %v181 = vpack.c.b16 %v179, %v178
    %184 = vmatprep.subr.bf16.mxu0 0
    %185 = vmatpush1.bf16.msra.mxu0 %v180
    %186 = vmatprep.subr.bf16.mxu0 0
    %187 = vmatpush1.bf16.msra.mxu0 %v181
    %188 = vmatprep.subr.bf16.mxu0 0
    %189 = vmatpush1.bf16.msra.mxu0 0
    %190 = vmatprep.subr.bf16.mxu0 0
    %191 = vmatpush1.bf16.msra.mxu0 0
    %192 = vmatprep.subr.bf16.mxu0 0
    %193 = vmatpush1.bf16.msra.mxu0 0
    %194 = vmatprep.subr.bf16.mxu0 0
    %195 = vmatpush1.bf16.msra.mxu0 0
    %196 = vmatprep.subr.bf16.mxu0 0
    %197 = vmatpush1.bf16.msra.mxu0 0
    %198 = vmatprep.subr.bf16.mxu0 0
    %199 = vmatpush1.bf16.msra.mxu0 0
    %200 = vmatprep.subr.bf16.mxu0 0
    %201 = vmatpush1.bf16.msra.mxu0 0
    %202 = vmatprep.subr.bf16.mxu0 0
    %203 = vmatpush1.bf16.msra.mxu0 0
    %204 = vmatprep.subr.bf16.mxu0 0
    %205 = vmatpush1.bf16.msra.mxu0 0
    %206 = vmatprep.subr.bf16.mxu0 0
    %207 = vmatpush1.bf16.msra.mxu0 0
    %208 = vmatprep.subr.bf16.mxu0 0
    %209 = vmatpush1.bf16.msra.mxu0 0
    %210 = vmatprep.subr.bf16.mxu0 0
    %211 = vmatpush1.bf16.msra.mxu0 0
    %212 = vmatprep.subr.bf16.mxu0 0
    %213 = vmatpush1.bf16.msra.mxu0 0
    %214 = vmatprep.subr.bf16.mxu0 0
    %215 = vmatpush1.bf16.msra.mxu0 0
    %216 = vmatprep.mubr.bf16.mxu0 0
    %217 = vmatmul.mubr.bf16.gmra.mrb[0].mxu0 %v130
    %v218 = vpop.f32.mrb[0].mxu0
    %v219 = vadd.f32 %v114, %v218
    %v220 = vpop.f32.mrb[0].mxu0
    %v221 = vpop.f32.mrb[0].mxu0
    %v222 = vpop.f32.mrb[0].mxu0
    %223 = vdwg.mxu0
    %v224 = vmax.f32 %v167, 0.0
    %v225 = vmax.f32 %v219, 0.0
    %v226 = vpack.c.bf16 %v224, %v224
    %v227 = vpack.c.bf16 %v225, %v225
    %v228 = vld [vmem:[#allocation8] sm:$0xf]
    %v229 = vld [vmem:[#allocation8 + $0x4] sm:$0xf]
    %v230 = vld [vmem:[#allocation10] sm:$0xf]
    %v231 = vld [vmem:[#allocation10 + $0x4] sm:$0xf]
    %v234 = vunpack.c.l.b16 %v226
    %v235 = vunpack.c.l.b16 %v227
    %v236 = vrot.slane %v234, 1
    %vm237 = vcmask 1041409
    %v238 = vsel %vm237, %v235, %v236
    %v239 = vpack.c.b16 %v238, %v238
    %v242 = vunpack.c.l.b16 %v230
    %v243 = vunpack.c.l.b16 %v231
    %v244 = vpack.c.b16 %v243, %v242
    %vm246 = vcmask 130048
    %v248 = vsel %vm246, %v239, 0
    %250 = vmatprep.subr.bf16.mxu0 0
    %251 = vmatpush1.bf16.msra.mxu0 %v244
    %252 = vmatprep.subr.bf16.mxu0 0
    %253 = vmatpush1.bf16.msra.mxu0 0
    %254 = vmatprep.subr.bf16.mxu0 0
    %255 = vmatpush1.bf16.msra.mxu0 0
    %256 = vmatprep.subr.bf16.mxu0 0
    %257 = vmatpush1.bf16.msra.mxu0 0
    %258 = vmatprep.subr.bf16.mxu0 0
    %259 = vmatpush1.bf16.msra.mxu0 0
    %260 = vmatprep.subr.bf16.mxu0 0
    %261 = vmatpush1.bf16.msra.mxu0 0
    %262 = vmatprep.subr.bf16.mxu0 0
    %263 = vmatpush1.bf16.msra.mxu0 0
    %264 = vmatprep.subr.bf16.mxu0 0
    %265 = vmatpush1.bf16.msra.mxu0 0
    %266 = vmatprep.subr.bf16.mxu0 0
    %267 = vmatpush1.bf16.msra.mxu0 0
    %268 = vmatprep.subr.bf16.mxu0 0
    %269 = vmatpush1.bf16.msra.mxu0 0
    %270 = vmatprep.subr.bf16.mxu0 0
    %271 = vmatpush1.bf16.msra.mxu0 0
    %272 = vmatprep.subr.bf16.mxu0 0
    %273 = vmatpush1.bf16.msra.mxu0 0
    %274 = vmatprep.subr.bf16.mxu0 0
    %275 = vmatpush1.bf16.msra.mxu0 0
    %276 = vmatprep.subr.bf16.mxu0 0
    %277 = vmatpush1.bf16.msra.mxu0 0
    %278 = vmatprep.subr.bf16.mxu0 0
    %279 = vmatpush1.bf16.msra.mxu0 0
    %280 = vmatprep.subr.bf16.mxu0 0
    %281 = vmatpush1.bf16.msra.mxu0 0
    %282 = vmatprep.mubr.bf16.mxu0 0
    %283 = vmatmul.mubr.bf16.gmra.mrb[0].mxu0 %v248
    %v284 = vpop.f32.mrb[0].mxu0
    %v285 = vadd.f32 0.0, %v284
    %v286 = vpop.f32.mrb[0].mxu0
    %v287 = vpop.f32.mrb[0].mxu0
    %v288 = vpop.f32.mrb[0].mxu0
    %289 = vdwg.mxu0
    %v290 = vrot.slane %v235, 7
    %v291 = vsel %vm237, %v290, %v234
    %v292 = vpack.c.b16 %v291, %v291
    %v295 = vunpack.c.l.b16 %v228
    %v296 = vunpack.c.l.b16 %v229
    %v297 = vpack.c.b16 %v296, %v295
    %v300 = vsel %vm246, %v292, 0
    %302 = vmatprep.subr.bf16.mxu0 0
    %303 = vmatpush1.bf16.msra.mxu0 %v297
    %304 = vmatprep.subr.bf16.mxu0 0
    %305 = vmatpush1.bf16.msra.mxu0 0
    %306 = vmatprep.subr.bf16.mxu0 0
    %307 = vmatpush1.bf16.msra.mxu0 0
    %308 = vmatprep.subr.bf16.mxu0 0
    %309 = vmatpush1.bf16.msra.mxu0 0
    %310 = vmatprep.subr.bf16.mxu0 0
    %311 = vmatpush1.bf16.msra.mxu0 0
    %312 = vmatprep.subr.bf16.mxu0 0
    %313 = vmatpush1.bf16.msra.mxu0 0
    %314 = vmatprep.subr.bf16.mxu0 0
    %315 = vmatpush1.bf16.msra.mxu0 0
    %316 = vmatprep.subr.bf16.mxu0 0
    %317 = vmatpush1.bf16.msra.mxu0 0
    %318 = vmatprep.subr.bf16.mxu0 0
    %319 = vmatpush1.bf16.msra.mxu0 0
    %320 = vmatprep.subr.bf16.mxu0 0
    %321 = vmatpush1.bf16.msra.mxu0 0
    %322 = vmatprep.subr.bf16.mxu0 0
    %323 = vmatpush1.bf16.msra.mxu0 0
    %324 = vmatprep.subr.bf16.mxu0 0
    %325 = vmatpush1.bf16.msra.mxu0 0
    %326 = vmatprep.subr.bf16.mxu0 0
    %327 = vmatpush1.bf16.msra.mxu0 0
    %328 = vmatprep.subr.bf16.mxu0 0
    %329 = vmatpush1.bf16.msra.mxu0 0
    %330 = vmatprep.subr.bf16.mxu0 0
    %331 = vmatpush1.bf16.msra.mxu0 0
    %332 = vmatprep.subr.bf16.mxu0 0
    %333 = vmatpush1.bf16.msra.mxu0 0
    %334 = vmatprep.mubr.bf16.mxu0 0
    %335 = vmatmul.mubr.bf16.gmra.mrb[0].mxu0 %v300
    %v336 = vpop.f32.mrb[0].mxu0
    %v337 = vadd.f32 %v285, %v336
    %v338 = vpop.f32.mrb[0].mxu0
    %v339 = vpop.f32.mrb[0].mxu0
    %v340 = vpop.f32.mrb[0].mxu0
    %341 = vdwg.mxu0
    %v342 = vld [vmem:[#allocation11] sm:$0x1]
    %v344 = vlaneseq
    %v345 = vshrl.u32 %v344, 7
    %v346 = vsub.s32 0, %v345
    %v347 = vrot.slane %v342, %v346
    %v349 = vadd.f32 %v337, %v347
    %v350 = vmax.f32 %v349, 0.0
    %v351 = vlaneseq
    %v352 = vand.u32 %v351, 127
    %vm353 = vcmp.lt.s32.totalorder %v352, 32
    %v354 = vsel %vm353, 1, 0
    %vm355 = vcmp.eq.s32.totalorder %v354, 1
    %v356 = vsel %vm355, %v350, -1e+30
    %vm357 = vcmask 1041408
    %v358 = vsel %vm357, %v356, -inf
    %359 = vmax.xlane.f32.xlu0 %v358
    %v360 = vpop.xlane.xlu0 %359
    %v361 = vsub.f32 %v356, %v360
    %v362 = vmul.f32 %v361, 1.442695
    %v363 = vpow.pop %v362
    %v364 = vsel %vm357, %v363, 0.0
    %365 = vadd.xlane.f32.xlu0 %v364
    %v366 = vpop.xlane.xlu0 %365
    %v367 = vrcp.pop %v366
    %v368 = vmul.f32 %v363, %v367
    %369 = vst [vmem:[#allocation13] sm:$0x3] %v368
    // Predicated region
    $region50: #{tpu_custom_call.1} parent=1 // pred_check
      _
    $region51: #{tpu_custom_call.1} parent=1 // pred_check_branch
      %371 = sbr.rel (0) target = $region53
    $region52: #{tpu_custom_call.1} parent=1 // pred_region
      %s373 = ssub.s32 32, 32
      %374 = vsyncadd [#allocation4], %s373
      %s376 = sshll.u32 [#allocation13], 4
      %s377 = int_to_ptr.vmem [resolvable:$true] %s376
      %379 = dma.vmem_to_hbm [thread:$0]  %s377, 32, %s6, [#allocation4]
    $region53: #{tpu_custom_call.1} parent=1 // pred_fallthru
      _
    // Predicated region
    $region54: #{tpu_custom_call.1} parent=1 // pred_check
      _
    $region55: #{tpu_custom_call.1} parent=1 // pred_check_branch
      %381 = sbr.rel (0) target = $region57
    $region56: #{tpu_custom_call.1} parent=1 // pred_region
      %382 = dma.done [#allocation4], 32
    $region57: #{tpu_custom_call.1} parent=1 // pred_fallthru
      _
    %383 = vsyncpa [#allocation3], 1
    %384 = vsyncpa [#allocation6], 1
    %385 = vsyncpa [#allocation9], 1
    %386 = vsyncpa [#allocation12], 1
    %387 = vsyncpa [#allocation4], 1

</llo_original>
